<compile_context>
chip_gen: v6e
topology: v6e:2x2x1
jax: 0.10.0
libtpu: 0.0.40
codegen_flags: <defaults>
</compile_context>

<pallas_src>
from functools import partial

import jax
import jax.numpy as jnp
from jax.experimental import pallas as pl
from jax.experimental.pallas import tpu as pltpu

LANE = 128
SUBLANE = 8


def _round_up(x, m):
    return (x + m - 1) // m * m


def fused_ctc_kernel(x_ref, wf_ref, bf_ref, out_ref):
    """One grid step = one tile of M = N*W flattened sequence rows.

    x_ref  : (TM, C)   bf16 activations (Im2Seq rows, channel-last)
    wf_ref : (C, NCP)  bf16 fused weight  (W1 @ W2, classes zero-padded to NCP lanes)
    bf_ref : (1, NCP)  f32  fused bias    (pad classes carry -1e30 so softmax mass is 0)
    out_ref: (TM, NCP) bf16 softmax probabilities (lane-dense, unmasked stores)
    """
    # Standard (M, K) @ (K, N) MXU matmul, f32 accumulation.
    logits = jnp.dot(x_ref[...], wf_ref[...], preferred_element_type=jnp.float32)
    logits = logits + bf_ref[...]

    # Max-stabilized softmax over classes in f32; reciprocal goes to the EUP slot.
    m = jnp.max(logits, axis=-1, keepdims=True)
    e = jnp.exp(logits - m)
    inv = pl.reciprocal(jnp.sum(e, axis=-1, keepdims=True), approx=True)
    out_ref[...] = (e * inv).astype(out_ref.dtype)


def prepare_ctc_params(w1, b1, w2, b2):
    """One-time parameter preprocessing (hoisted out of the per-call forward).

    Fuses the neck FC and the CTC head FC (exact in real arithmetic; EncoderWithFC applies no
    activation between them in eval mode) and pads classes to a full 128-lane block.
    """
    C = w1.shape[0]
    nclass = w2.shape[1]
    ncp = _round_up(nclass, LANE)

    w1f = w1.astype(jnp.float32)
    w2f = w2.astype(jnp.float32)
    wf = w1f @ w2f                                                  # (C, nclass)
    bf = b1.astype(jnp.float32) @ w2f + b2.astype(jnp.float32)      # (1, nclass)

    wf_p = jnp.zeros((C, ncp), jnp.float32).at[:, :nclass].set(wf).astype(jnp.bfloat16)
    bf_p = jnp.full((1, ncp), -1e30, jnp.float32).at[:, :nclass].set(bf)
    return wf_p, bf_p, nclass


@partial(jax.jit, static_argnums=(3,))
def multihead_forward(x_nchw, wf_p, bf_p, nclass):
    """Inference forward of MultiHead (CTC branch only, as returned in eval mode).

    Returns bf16 softmax probabilities of shape (N, W, nclass).
    """
    N, C, H, W = x_nchw.shape
    assert H == 1, "Im2Seq requires H == 1"
    ncp = wf_p.shape[1]
    M = N * W

    # Im2Seq in the wrapper: a single cheap HBM transpose of the (small) bf16 activation
    # tensor yields one flattened, channel-last (M, C) slab for a standard matmul.
    x_seq = jnp.transpose(x_nchw.reshape(N, C, W).astype(jnp.bfloat16), (0, 2, 1)).reshape(M, C)

    # M-tile: large enough to amortize per-grid-step overhead, small enough that we get at
    # least two parallel grid steps (keeps v7x's second TensorCore busy even at batch==1).
    # VMEM per step at tm=1024: ~128 KiB activations + ~256 KiB output (bf16) — negligible.
    tm = min(1024, max(SUBLANE, _round_up((M + 1) // 2, SUBLANE)))
    m_pad = _round_up(M, tm)
    if m_pad != M:
        # Pad rows are at most tm-1 and produce harmless (sliced-off) softmax rows.
        x_seq = jnp.pad(x_seq, ((0, m_pad - M), (0, 0)))

    out = pl.pallas_call(
        fused_ctc_kernel,
        out_shape=jax.ShapeDtypeStruct((m_pad, ncp), jnp.bfloat16),
        grid=(m_pad // tm,),
        in_specs=[
            pl.BlockSpec((tm, C), lambda i: (i, 0)),     # activations tile
            pl.BlockSpec((C, ncp), lambda i: (0, 0)),    # fused weight (resident)
            pl.BlockSpec((1, ncp), lambda i: (0, 0)),    # fused bias   (resident)
        ],
        out_specs=pl.BlockSpec((tm, ncp), lambda i: (i, 0)),
        compiler_params=pltpu.CompilerParams(
            dimension_semantics=("parallel",)),
    )(x_seq, wf_p, bf_p)

    # Drop row padding and the padded class lanes (pad lanes are exactly 0 probability).
    return out[:M].reshape(N, W, ncp)[:, :, :nclass]


def init_params(key, in_channels, hidden_size, num_classes):
    """Deterministic synthetic init matching the module's parameter shapes."""
    k1, k2, k3, k4 = jax.random.split(key, 4)
    # Stored transposed relative to nn.Linear (out, in) so y = x @ W + b.
    w1 = jax.random.normal(k1, (in_channels, hidden_size), jnp.float32) * 0.05
    b1 = jax.random.normal(k2, (1, hidden_size), jnp.float32) * 0.01
    w2 = jax.random.normal(k3, (hidden_size, num_classes), jnp.float32) * 0.05
    b2 = jax.random.normal(k4, (1, num_classes), jnp.float32) * 0.01
    return w1, b1, w2, b2


if __name__ == "__main__":
    # Small, module-consistent shapes: backbone output NCHW with H == 1.
    batch = 2
    in_channels = 64
    width = 16          # sequence length after Im2Seq
    hidden_size = 48    # Neck (EncoderWithFC) hidden size
    num_classes = 37    # out_channels_list['CTCLabelDecode']

    key = jax.random.PRNGKey(0)
    kx, kp = jax.random.split(key)
    x = jax.random.normal(kx, (batch, in_channels, 1, width), jnp.float32)
    w1, b1, w2, b2 = init_params(kp, in_channels, hidden_size, num_classes)

    # One-time parameter preprocessing (fusion + padding), reused across forwards.
    wf_p, bf_p, nclass = prepare_ctc_params(w1, b1, w2, b2)

    out = multihead_forward(x, wf_p, bf_p, nclass)
    out = jax.block_until_ready(out)

    # Reference: unfused f32 forward (Im2Seq -> Linear -> Linear -> softmax).
    seq = jnp.transpose(x[:, :, 0, :], (0, 2, 1))
    ref = jax.nn.softmax((seq @ w1 + b1) @ w2 + b2, axis=-1)

    assert out.shape == (batch, width, num_classes)
    out_f32 = out.astype(jnp.float32)
    assert jnp.allclose(jnp.sum(out_f32, axis=-1), 1.0, atol=2e-2)   # bf16 probs + approx recip
    assert jnp.allclose(out_f32, ref, atol=3e-2)                     # bf16 matmul/store + approx recip

    print("KERNEL_OK")
</pallas_src>

<mosaic_0001>
module attributes {stable_mosaic.version = 11 : i64} {
  func.func @fused_ctc_kernel(%arg0: i32, %arg1: memref<16x64xbf16, #tpu.memory_space<vmem>>, %arg2: memref<64x128xbf16, #tpu.memory_space<vmem>>, %arg3: memref<1x128xf32, #tpu.memory_space<vmem>>, %arg4: memref<16x128xbf16, #tpu.memory_space<vmem>>) attributes {dimension_semantics = [#tpu.dimension_semantics<parallel>], iteration_bounds = array<i64: 2>, scalar_prefetch = 0 : i64, scratch_operands = 0 : i64, tpu.core_type = #tpu.core_type<tc>, window_params = [{transform_indices = @transform_0, window_bounds = array<i64: 16, 64>}, {pipeline_mode = #tpu.pipeline_mode<synchronous>, transform_indices = @transform_1, window_bounds = array<i64: 64, 128>}, {pipeline_mode = #tpu.pipeline_mode<synchronous>, transform_indices = @transform_2, window_bounds = array<i64: 1, 128>}, {transform_indices = @transform_3, window_bounds = array<i64: 16, 128>}]} {
    %c0 = arith.constant 0 : index
    %c0_0 = arith.constant 0 : index
    %0 = vector.load %arg1[%c0, %c0_0] : memref<16x64xbf16, #tpu.memory_space<vmem>>, vector<16x64xbf16>
    %c0_1 = arith.constant 0 : index
    %c0_2 = arith.constant 0 : index
    %1 = vector.load %arg2[%c0_1, %c0_2] : memref<64x128xbf16, #tpu.memory_space<vmem>>, vector<64x128xbf16>
    %cst = arith.constant dense<0.000000e+00> : vector<16x128xf32>
    %2 = tpu.matmul %0, %1, %cst {dimension_numbers = #tpu.dot_dimension_numbers<[1], [0], [0], [1], [0, 0, 1, 1], [], []>} : vector<16x64xbf16>, vector<64x128xbf16>, vector<16x128xf32> -> vector<16x128xf32>
    %c0_3 = arith.constant 0 : index
    %c0_4 = arith.constant 0 : index
    %3 = vector.load %arg3[%c0_3, %c0_4] : memref<1x128xf32, #tpu.memory_space<vmem>>, vector<1x128xf32>
    %4 = vector.broadcast %3 : vector<1x128xf32> to vector<16x128xf32>
    %5 = arith.addf %2, %4 : vector<16x128xf32>
    %cst_5 = arith.constant dense<0xFF800000> : vector<16xf32>
    %6 = vector.multi_reduction <maximumf>, %5, %cst_5 [1] : vector<16x128xf32> to vector<16xf32>
    %7 = vector.shape_cast %6 : vector<16xf32> to vector<16x1xf32>
    %8 = vector.broadcast %7 : vector<16x1xf32> to vector<16x128xf32>
    %9 = arith.subf %5, %8 : vector<16x128xf32>
    %10 = math.exp %9 : vector<16x128xf32>
    %cst_6 = arith.constant dense<0.000000e+00> : vector<16xf32>
    %11 = vector.multi_reduction <add>, %10, %cst_6 [1] : vector<16x128xf32> to vector<16xf32>
    %12 = vector.shape_cast %11 : vector<16xf32> to vector<16x1xf32>
    %13 = tpu.reciprocal %12 {approx = true} : vector<16x1xf32> -> vector<16x1xf32>
    %14 = vector.broadcast %13 : vector<16x1xf32> to vector<16x128xf32>
    %15 = arith.mulf %10, %14 : vector<16x128xf32>
    %16 = arith.truncf %15 : vector<16x128xf32> to vector<16x128xbf16>
    %c0_7 = arith.constant 0 : index
    %c0_8 = arith.constant 0 : index
    %17 = vector.load %arg4[%c0_7, %c0_8] : memref<16x128xbf16, #tpu.memory_space<vmem>>, vector<16x128xbf16>
    tpu.vector_store %arg4[%c0_7, %c0_8], %16 {strides = array<i32>} : memref<16x128xbf16, #tpu.memory_space<vmem>>, vector<16x128xbf16>,
    return
  }
  func.func @transform_0(%arg0: i32) -> (i32, i32) {
    %c0_i32 = arith.constant 0 : i32
    %c0_i32_0 = arith.constant 0 : i32
    return %arg0, %c0_i32 : i32, i32
  }
  func.func @transform_1(%arg0: i32) -> (i32, i32) {
    %c0_i32 = arith.constant 0 : i32
    %c0_i32_0 = arith.constant 0 : i32
    %c0_i32_1 = arith.constant 0 : i32
    return %c0_i32, %c0_i32_0 : i32, i32
  }
  func.func @transform_2(%arg0: i32) -> (i32, i32) {
    %c0_i32 = arith.constant 0 : i32
    %c0_i32_0 = arith.constant 0 : i32
    %c0_i32_1 = arith.constant 0 : i32
    return %c0_i32, %c0_i32_0 : i32, i32
  }
  func.func @transform_3(%arg0: i32) -> (i32, i32) {
    %c0_i32 = arith.constant 0 : i32
    %c0_i32_0 = arith.constant 0 : i32
    return %arg0, %c0_i32 : i32, i32
  }
}

</mosaic_0001>

<llo_original>
// kernel: multihead_forward.1
$region0: #{multihead_forward.1}
  #allocation0 [shape = 'u32[]', space=smem, size = 0x4, offset = 0x4, fixed_abs, tag = 'smem constant byte address 0x4 - core index']
  #allocation1 [shape = 'u32[144,128]{1,0:T(1,128)}', space=vmem, size = 0x12000, scoped, tag = 'internal scratch']
  %s0 = inlined_call_operand.vmem [shape: bf16[32,64], index: 0, kind: input, shape index: {}]
  %s1 = inlined_call_operand.vmem [shape: bf16[64,128], index: 1, kind: input, shape index: {}]
  %s2 = inlined_call_operand.vmem [shape: f32[1,128], index: 2, kind: input, shape index: {}]
  %s3 = inlined_call_operand.hbm [shape: bf16[32,128], index: 3, kind: output, shape index: {}]
  %s4 = sld [smem:[#allocation0]]
  $region45: #{multihead_forward.1} parent=0
    _
  %s6 = ssub.s32 1, %s4
  %s7 = scalar_select 0, %s6, %s4
  $region1: #{multihead_forward.1} parent=0
    #allocation2 [shape = 'u8[8192]{0}', space=vmem, size = 0x2000, scoped, tag = 'output window, operand 0']
    #allocation3 [shape = 's32[2]{0}', space=sflag, size = 0x8, scoped, tag = 'scoped memory for multihead_forward.1']
    %8 = vsyncpa [#allocation3], 0
    %s9 = scalar_lea.sflag [#allocation3], 1
    %10 = vsyncpa %s9, 0
    loop: start=0, step=1, limit=4
    $region2: #{multihead_forward.1} parent=1 // loop_pre_header
      _
    $region3: #{multihead_forward.1} parent=1 // loop_header
      %s12 = sphi 0, %s16
      %p13 = scmp.ge.s32.totalorder %s12, 4
      %s22 = sphi 0, %s24
      %s25 = sphi 0, %s22
      %s26 = sphi 0, %s25
      %s42 = sphi 0, %s26
      %s46 = sphi 0, %s46
      %s48 = sphi 0, %s46
      %s49 = sphi 0, %s48
      %s63 = sphi 0, %s49
      %s67 = sphi 0, %s67
      %s69 = sphi 0, %s67
      %s70 = sphi 0, %s69
      %s84 = sphi 0, %s70
      %s90 = sphi 0, %s92
      %s93 = sphi 0, %s90
      %s94 = sphi 0, %s93
      %s110 = sphi 0, %s94
    $region4: #{multihead_forward.1} parent=1 // loop_header_branch
      %15 = sbr.rel (%p13) target = $region8
    $region5: #{multihead_forward.1} parent=1 // loop_body
      %s17 = ssub.s32 %s12, 1
      %s18 = ssub.s32 %s12, 2
      %s19 = sadd.s32 %s12, 1
      %s20 = ssub.s32 %s12, %s19
      %p21 = scmp.eq.s32.totalorder %s20, 0
      %s23 = sadd.s32 %s22, 1
      %s24 = scalar_select %p21, %s22, %s23
      %p27 = pneg %p21
      %p28 = scmp.eq.s32.totalorder %s12, 1
      %p29 = por %p27, %p28
      %p30 = scmp.ne.s32.totalorder %s22, %s25
      %p31 = scmp.eq.s32.totalorder %s12, 0
      %p32 = por %p30, %p31
      %p33 = scmp.ne.s32.totalorder %s22, %s25
      %p34 = scmp.eq.s32.totalorder %s17, 1
      %p35 = por %p33, %p34
      %p36 = scmp.ne.s32.totalorder %s25, %s26
      %p37 = scmp.eq.s32.totalorder %s17, 0
      %p38 = por %p36, %p37
      %p39 = scmp.ne.s32.totalorder %s25, %s26
      %p40 = scmp.eq.s32.totalorder %s18, 1
      %p41 = por %p39, %p40
      %p43 = scmp.ne.s32.totalorder %s26, %s42
      %p44 = scmp.eq.s32.totalorder %s18, 0
      %p45 = por %p43, %p44
      %s47 = sadd.s32 %s46, 1
      %p50 = scmp.eq.s32.totalorder %s12, 1
      %p51 = scmp.ne.s32.totalorder %s46, %s48
      %p52 = scmp.eq.s32.totalorder %s12, 0
      %p53 = por %p51, %p52
      %p54 = scmp.ne.s32.totalorder %s46, %s48
      %p55 = scmp.eq.s32.totalorder %s17, 1
      %p56 = por %p54, %p55
      %p57 = scmp.ne.s32.totalorder %s48, %s49
      %p58 = scmp.eq.s32.totalorder %s17, 0
      %p59 = por %p57, %p58
      %p60 = scmp.ne.s32.totalorder %s48, %s49
      %p61 = scmp.eq.s32.totalorder %s18, 1
      %p62 = por %p60, %p61
      %p64 = scmp.ne.s32.totalorder %s49, %s63
      %p65 = scmp.eq.s32.totalorder %s18, 0
      %p66 = por %p64, %p65
      %s68 = sadd.s32 %s67, 1
      %p71 = scmp.eq.s32.totalorder %s12, 1
      %p72 = scmp.ne.s32.totalorder %s67, %s69
      %p73 = scmp.eq.s32.totalorder %s12, 0
      %p74 = por %p72, %p73
      %p75 = scmp.ne.s32.totalorder %s67, %s69
      %p76 = scmp.eq.s32.totalorder %s17, 1
      %p77 = por %p75, %p76
      %p78 = scmp.ne.s32.totalorder %s69, %s70
      %p79 = scmp.eq.s32.totalorder %s17, 0
      %p80 = por %p78, %p79
      %p81 = scmp.ne.s32.totalorder %s69, %s70
      %p82 = scmp.eq.s32.totalorder %s18, 1
      %p83 = por %p81, %p82
      %p85 = scmp.ne.s32.totalorder %s70, %s84
      %p86 = scmp.eq.s32.totalorder %s18, 0
      %p87 = por %p85, %p86
      %s88 = ssub.s32 %s12, %s19
      %p89 = scmp.eq.s32.totalorder %s88, 0
      %s91 = sadd.s32 %s90, 1
      %s92 = scalar_select %p89, %s90, %s91
      %p95 = pneg %p89
      %p96 = scmp.eq.s32.totalorder %s12, 1
      %p97 = por %p95, %p96
      %p98 = scmp.ne.s32.totalorder %s90, %s93
      %p99 = scmp.eq.s32.totalorder %s12, 0
      %p100 = por %p98, %p99
      %p101 = scmp.ne.s32.totalorder %s90, %s93
      %p102 = scmp.eq.s32.totalorder %s17, 1
      %p103 = por %p101, %p102
      %p104 = scmp.ne.s32.totalorder %s93, %s94
      %p105 = scmp.eq.s32.totalorder %s17, 0
      %p106 = por %p104, %p105
      %p107 = scmp.ne.s32.totalorder %s93, %s94
      %p108 = scmp.eq.s32.totalorder %s18, 1
      %p109 = por %p107, %p108
      %p111 = scmp.ne.s32.totalorder %s94, %s110
      %p112 = scmp.eq.s32.totalorder %s18, 0
      %p113 = por %p111, %p112
      %p114 = scmp.le.s32.totalorder 1, %s12
      %p115 = scmp.lt.s32.totalorder %s12, 3
      %p116 = pnand %p114, %p115
      %p117 = pneg %p116
      // Predicated region
      $region9: #{multihead_forward.1} parent=5 // pred_check
        _
      $region10: #{multihead_forward.1} parent=5 // pred_check_branch
        %119 = sbr.rel (%p116) target = $region12
      $region11: #{multihead_forward.1} parent=5 // pred_region
        %s120 = ssub.s32 %s12, 1
        // Predicated region
        $region13: #{multihead_forward.1} parent=11 // pred_check
          %p121 = pneg %p59
        $region14: #{multihead_forward.1} parent=11 // pred_check_branch
          %123 = sbr.rel (%p121) target = $region16
        $region15: #{multihead_forward.1} parent=11 // pred_region
          _
        $region16: #{multihead_forward.1} parent=11 // pred_fallthru
          _
        // Predicated region
        $region17: #{multihead_forward.1} parent=11 // pred_check
          %p124 = pneg %p80
        $region18: #{multihead_forward.1} parent=11 // pred_check_branch
          %126 = sbr.rel (%p124) target = $region20
        $region19: #{multihead_forward.1} parent=11 // pred_region
          _
        $region20: #{multihead_forward.1} parent=11 // pred_fallthru
          _
      $region12: #{multihead_forward.1} parent=5 // pred_fallthru
        _
      %p127 = scmp.lt.s32.totalorder %s12, 2
      // Predicated region
      $region21: #{multihead_forward.1} parent=5 // pred_check
        %p128 = pneg %p127
      $region22: #{multihead_forward.1} parent=5 // pred_check_branch
        %130 = sbr.rel (%p128) target = $region24
      $region23: #{multihead_forward.1} parent=5 // pred_region
        // Predicated region
        $region25: #{multihead_forward.1} parent=23 // pred_check
          %p131 = pneg %p32
        $region26: #{multihead_forward.1} parent=23 // pred_check_branch
          %133 = sbr.rel (%p131) target = $region28
        $region27: #{multihead_forward.1} parent=23 // pred_region
          %s134 = smul.u32 2, %s12
          %p135 = scmp.lt.s32.totalorder %s134, 3
          %s136 = scalar_select %p135, %s134, 3
          %s137 = smul.addr %s136, 4
          %s138 = scalar_lea.vmem %s0, %s137
          %s139 = smul.u32 2, %s12
        $region28: #{multihead_forward.1} parent=23 // pred_fallthru
          _
      $region24: #{multihead_forward.1} parent=5 // pred_fallthru
        _
      %p140 = scmp.le.s32.totalorder 1, %s12
      %p141 = scmp.lt.s32.totalorder %s12, 3
      %p142 = pnand %p140, %p141
      %p143 = pneg %p142
      // Predicated region
      $region29: #{multihead_forward.1} parent=5 // pred_check
        _
      $region30: #{multihead_forward.1} parent=5 // pred_check_branch
        %145 = sbr.rel (%p142) target = $region32
      $region31: #{multihead_forward.1} parent=5 // pred_region
        %s146 = ssub.s32 %s12, 1
        %s147 = smul.u32 2, %s17
        %p148 = scmp.lt.s32.totalorder %s147, 3
        %s149 = scalar_select %p148, %s147, 3
        %s150 = smul.addr %s149, 4
        %s151 = scalar_lea.vmem %s0, %s150
        %p152 = pneg %p38
        %p153 = pneg %p35
        %p154 = pneg %p59
        %p155 = pneg %p56
        %p156 = pneg %p80
        %p157 = pneg %p77
        %p158 = pneg %p106
        %p159 = pneg %p103
        %s160 = sand.u32 %s93, 1
        %s161 = scalar_lea.sflag [#allocation3], %s160
        %s162 = sand.u32 %s93, 1
        %s163 = smul.addr %s162, 8
        %s164 = scalar_lea.vmem [#allocation2], %s163
        %s165 = smul.u32 2, %s17
        %p166 = scmp.lt.s32.totalorder %s165, 3
        %s167 = scalar_select %p166, %s165, 3
        %s168 = smul.addr %s167, 4
        %s169 = scalar_lea.vmem %s0, %s168
        %s170 = smul.u32 2, %s17
        %s171 = smul.u32 2, %s17
        %v173 = vld [vmem:[%s169] sm:$0xf]
        %v174 = vld [vmem:[%s169 + $0x4] sm:$0xf]
        %v175 = vld [vmem:[%s1] sm:$0xf]
        %v176 = vld [vmem:[%s1 + $0x4] sm:$0xf]
        %v177 = vld [vmem:[%s1 + $0x8] sm:$0xf]
        %v178 = vld [vmem:[%s1 + $0xc] sm:$0xf]
        %v179 = vld [vmem:[%s1 + $0x10] sm:$0xf]
        %v180 = vld [vmem:[%s1 + $0x14] sm:$0xf]
        %v181 = vld [vmem:[%s1 + $0x18] sm:$0xf]
        %v182 = vld [vmem:[%s1 + $0x1c] sm:$0xf]
        %v183 = vld [vmem:[%s2] sm:$0x1]
        %v185 = vlaneseq
        %v186 = vshrl.u32 %v185, 7
        %v187 = vsub.s32 0, %v186
        %v188 = vrot.slane %v183, %v187
        %v192 = vunpack.c.l.b16 %v173
        %v193 = vunpack.c.l.b16 %v174
        %v194 = vpack.c.b16 %v193, %v192
        %v203 = vunpack.c.l.b16 %v175
        %v204 = vunpack.c.l.b16 %v176
        %v205 = vunpack.c.l.b16 %v177
        %v206 = vunpack.c.l.b16 %v178
        %v207 = vunpack.c.l.b16 %v179
        %v208 = vunpack.c.l.b16 %v180
        %v209 = vunpack.c.l.b16 %v181
        %v210 = vunpack.c.l.b16 %v182
        %v211 = vpack.c.b16 %v204, %v203
        %v212 = vpack.c.b16 %v206, %v205
        %v213 = vpack.c.b16 %v208, %v207
        %v214 = vpack.c.b16 %v210, %v209
        %vm219 = vcmask 523264
        %v221 = vsel %vm219, %v194, 0
        %223 = vmatprep.subr.bf16.mxu0 0
        %224 = vmatpush1.bf16.msra.mxu0 0
        %225 = vmatprep.subr.bf16.mxu0 0
        %226 = vmatpush1.bf16.msra.mxu0 0
        %227 = vmatprep.subr.bf16.mxu0 0
        %228 = vmatpush1.bf16.msra.mxu0 0
        %229 = vmatprep.subr.bf16.mxu0 0
        %230 = vmatpush1.bf16.msra.mxu0 0
        %231 = vmatprep.subr.bf16.mxu0 0
        %232 = vmatpush1.bf16.msra.mxu0 %v214
        %233 = vmatprep.subr.bf16.mxu0 0
        %234 = vmatpush1.bf16.msra.mxu0 %v213
        %235 = vmatprep.subr.bf16.mxu0 0
        %236 = vmatpush1.bf16.msra.mxu0 %v212
        %237 = vmatprep.subr.bf16.mxu0 0
        %238 = vmatpush1.bf16.msra.mxu0 %v211
        %239 = vmatprep.subr.bf16.mxu0 0
        %240 = vmatpush2.bf16.msra.mxu0 0
        %241 = vmatprep.subr.bf16.mxu0 0
        %242 = vmatpush2.bf16.msra.mxu0 0
        %243 = vmatprep.subr.bf16.mxu0 0
        %244 = vmatpush2.bf16.msra.mxu0 0
        %245 = vmatprep.subr.bf16.mxu0 0
        %246 = vmatpush2.bf16.msra.mxu0 0
        %247 = vmatprep.subr.bf16.mxu0 0
        %248 = vmatpush2.bf16.msra.mxu0 0
        %249 = vmatprep.subr.bf16.mxu0 0
        %250 = vmatpush2.bf16.msra.mxu0 0
        %251 = vmatprep.subr.bf16.mxu0 0
        %252 = vmatpush2.bf16.msra.mxu0 0
        %253 = vmatprep.subr.bf16.mxu0 0
        %254 = vmatpush2.bf16.msra.mxu0 0
        %255 = vmatprep.mubr.bf16.mxu0 0
        %256 = vmatmul.mubr.bf16.gmra.mxu0 %v221
        %v257 = vpop.f32.mrf.mxu0
        %v258 = vadd.f32 %v188, %v257
        %v259 = vpop.f32.mrf.mxu0
        %v260 = vpop.f32.mrf.mxu0
        %v261 = vadd.f32 %v188, %v260
        %v262 = vpop.f32.mrf.mxu0
        %263 = vdwg.mxu0
        %264 = vmax.xlane.f32.xlu0 %v258
        %v265 = vpop.xlane.xlu0 %264
        %266 = vmax.xlane.f32.xlu0 %v261
        %v267 = vpop.xlane.xlu0 %266
        %v268 = vsub.f32 %v258, %v265
        %v269 = vsub.f32 %v261, %v267
        %v270 = vmul.f32 %v268, 1.442695
        %v271 = vpow.pop %v270
        %v272 = vmul.f32 %v269, 1.442695
        %v273 = vpow.pop %v272
        %274 = vadd.xlane.f32.xlu0 %v271
        %v275 = vpop.xlane.xlu0 %274
        %276 = vadd.xlane.f32.xlu0 %v273
        %v277 = vpop.xlane.xlu0 %276
        %v278 = vrcp.pop %v275
        %v279 = vrcp.pop %v277
        %v280 = vmul.f32 %v271, %v278
        %v281 = vmul.f32 %v273, %v279
        %v282 = vpack.c.bf16 %v281, %v280
        %v284 = vunpack.c.l.b16 %v282
        %v285 = vunpack.c.h.b16 %v282
        %v286 = vpack.c.b16 %v284, %v284
        %v287 = vpack.c.b16 %v285, %v285
        %290 = vst [vmem:[%s164] sm:$0xf] %v286
        %291 = vst [vmem:[%s164 + $0x4] sm:$0xf] %v287
        %s292 = sand.u32 %s93, 1
        %s293 = scalar_lea.sflag [#allocation3], %s292
        %s294 = sand.u32 %s93, 1
        %s295 = smul.addr %s294, 8
        %s296 = scalar_lea.vmem [#allocation2], %s295
        // Predicated region
        $region33: #{multihead_forward.1} parent=31 // pred_check
          %p297 = pneg %p103
        $region34: #{multihead_forward.1} parent=31 // pred_check_branch
          %299 = sbr.rel (%p297) target = $region36
        $region35: #{multihead_forward.1} parent=31 // pred_region
          %s300 = smul.u32 2, %s17
          %s302 = ssub.s32 128, 128
          %303 = vsyncadd %s293, %s302
          %s304 = smul.addr %s300, 64
          %s305 = scalar_lea.hbm %s3, %s304
          %s306 = sshll.u32 %s296, 4
          %s307 = int_to_ptr.vmem [resolvable:$true] %s306
          %312 = dma.vmem_to_hbm [thread:$0]  %s307, 128, %s305, %s293, 64, 64, 4
        $region36: #{multihead_forward.1} parent=31 // pred_fallthru
          _
      $region32: #{multihead_forward.1} parent=5 // pred_fallthru
        _
      %p313 = scmp.le.s32.totalorder 2, %s12
      // Predicated region
      $region37: #{multihead_forward.1} parent=5 // pred_check
        %p314 = pneg %p313
      $region38: #{multihead_forward.1} parent=5 // pred_check_branch
        %316 = sbr.rel (%p314) target = $region40
      $region39: #{multihead_forward.1} parent=5 // pred_region
        %s317 = ssub.s32 %s12, 2
        // Predicated region
        $region41: #{multihead_forward.1} parent=39 // pred_check
          %p318 = pneg %p109
        $region42: #{multihead_forward.1} parent=39 // pred_check_branch
          %320 = sbr.rel (%p318) target = $region44
        $region43: #{multihead_forward.1} parent=39 // pred_region
          %s321 = sand.u32 %s94, 1
          %s322 = scalar_lea.sflag [#allocation3], %s321
          %s323 = sand.u32 %s94, 1
          %s324 = smul.addr %s323, 8
          %s325 = scalar_lea.vmem [#allocation2], %s324
          %326 = dma.done %s322, 128
        $region44: #{multihead_forward.1} parent=39 // pred_fallthru
          _
      $region40: #{multihead_forward.1} parent=5 // pred_fallthru
        _
    $region6: #{multihead_forward.1} parent=1 // loop_footer
      %s16 = sadd.s32 1, %s12
    $region7: #{multihead_forward.1} parent=1 // loop_footer_branch
      %11 = sbr.rel target = $region3
    $region8: #{multihead_forward.1} parent=1 // loop_exit
      _
    %327 = vsyncpa [#allocation3], 1
    %s328 = scalar_lea.sflag [#allocation3], 1
    %329 = vsyncpa %s328, 1

</llo_original>
